<compile_context>
chip_gen: v7x
topology: tpu7x:2x2x1
jax: 0.10.0
libtpu: 0.0.40
codegen_flags: <defaults>
</compile_context>

<pallas_src>
import jax
import jax.numpy as jnp
from jax.experimental import pallas as pl
from jax.experimental.pallas import tpu as pltpu


def fused_gcn_kernel(adj_ref, x_ref, p1_ref, w_ref, b_ref, o_ref):
    adj = adj_ref[...]                       # (N, N)  bf16 edge multiplicities
    x = x_ref[...]                           # (N, 1)  f32   (F_in = 1)

    # ---- Layer 1 (F_in = 1, rank-1) --------------------------------------
    # Neighbourhood sum = one bf16 MXU matvec; the two rank-1 outer products
    # and the bias run on the VPU in f32 via broadcasting.
    agg = jnp.dot(adj, x.astype(jnp.bfloat16),
                  preferred_element_type=jnp.float32)          # (N, 1) f32
    h = (agg * p1_ref[0:1, :]                # W_rel row   (1, HP)
         + x * p1_ref[1:2, :]                # W_root row
         + p1_ref[2:3, :])                   # bias row
    h = jnp.maximum(h, 0.0)                  # x1; padded lanes stay exactly 0

    # ---- Layers 2..4 (activations stay resident, one K=2*HP dot each) -----
    for i, apply_relu in ((0, True), (1, False), (2, False)):
        h_bf = h.astype(jnp.bfloat16)                                    # (N, HP)
        agg = jnp.dot(adj, h_bf, preferred_element_type=jnp.float32)     # (N, HP) f32
        lhs = jnp.concatenate([agg.astype(jnp.bfloat16), h_bf], axis=-1)  # (N, 2*HP)
        out = (jnp.dot(lhs, w_ref[i], preferred_element_type=jnp.float32)
               + b_ref[i:i + 1, :])          # single K=256 MXU pass + bias
        if apply_relu:
            out = jnp.maximum(out, 0.0)
        h = out + h                          # residual (f32 path)

    o_ref[...] = h                           # lane-dense (N, HP) store


def gcn_forward(adj_bf16, x, p1, w_stack, b_stack):
    """Fused 4-layer GCN over a batch of graphs.

    adj_bf16: (B, N, N) bf16 dense adjacency, adj[b, dst, src] = multiplicity
    x:        (B, N, 1) f32 node features
    p1:       (3, HP)   f32 layer-1 rows [W_rel_row, W_root_row, bias]
    w_stack:  (3, 2*HP, HP) bf16 layers 2..4 with [W_rel; W_root] on the K dim
    b_stack:  (3, HP)   f32 layers 2..4 biases
    Returns (B, N, HP) f32; lanes >= hidden are exactly zero (keep the padded
    layout downstream instead of slicing it back out).
    """
    bsz, n, _ = adj_bf16.shape
    hp = w_stack.shape[-1]
    return pl.pallas_call(
        fused_gcn_kernel,
        out_shape=jax.ShapeDtypeStruct((bsz, n, hp), jnp.float32),
        grid=(bsz,),
        in_specs=[
            pl.BlockSpec((None, n, n), lambda b: (b, 0, 0)),          # adj (per graph)
            pl.BlockSpec((None, n, 1), lambda b: (b, 0, 0)),          # x   (per graph)
            pl.BlockSpec((3, hp), lambda b: (0, 0)),                  # p1   (shared)
            pl.BlockSpec((3, 2 * hp, hp), lambda b: (0, 0, 0)),       # w    (shared)
            pl.BlockSpec((3, hp), lambda b: (0, 0)),                  # bias (shared)
        ],
        out_specs=pl.BlockSpec((None, n, hp), lambda b: (b, 0, 0)),
        compiler_params=pltpu.CompilerParams(
            dimension_semantics=("parallel",)),
    )(adj_bf16, x, p1, w_stack, b_stack)


def init_graphconv_params(key, in_ch, out_ch):
    """Deterministic init (uniform +-1/sqrt(fan_in), like torch Linear)."""
    k_rel, k_root, k_b = jax.random.split(key, 3)
    bound = 1.0 / jnp.sqrt(jnp.float32(in_ch))
    w_rel = jax.random.uniform(k_rel, (in_ch, out_ch), jnp.float32, -bound, bound)
    w_root = jax.random.uniform(k_root, (in_ch, out_ch), jnp.float32, -bound, bound)
    b = jax.random.uniform(k_b, (out_ch,), jnp.float32, -bound, bound)
    return w_rel, w_root, b


if __name__ == "__main__":
    key = jax.random.PRNGKey(0)
    k_x, k_e, k_p1, k_p2, k_p3, k_p4 = jax.random.split(key, 6)

    # Small shapes: B=2 graphs, N=64 nodes, 1 input feature, hidden=32, E=256.
    B, N, F_IN, HIDDEN, HP, E = 2, 64, 1, 32, 128, 256

    x = jax.random.normal(k_x, (B, N, F_IN), jnp.float32)
    edge_index = jax.random.randint(k_e, (B, 2, E), 0, N, jnp.int32)

    # Densify edge_index into adjacency (PyG GraphConv 'add' aggregation over
    # incoming edges); small integer multiplicities are exact in bf16.
    adj = jnp.zeros((B, N, N), jnp.float32)
    for b in range(B):
        adj = adj.at[b, edge_index[b, 1], edge_index[b, 0]].add(1.0)
    adj_bf16 = adj.astype(jnp.bfloat16)

    raw_params = (
        init_graphconv_params(k_p1, F_IN, HIDDEN),
        init_graphconv_params(k_p2, HIDDEN, HIDDEN),
        init_graphconv_params(k_p3, HIDDEN, HIDDEN),
        init_graphconv_params(k_p4, HIDDEN, HIDDEN),
    )

    # --- Pack / zero-pad params for the fused kernel ----------------------
    # Layer 1 (F_in = 1): rows 0/1/2 = W_rel row, W_root row, bias. (3, HP) f32.
    w_rel1, w_root1, b1 = raw_params[0]
    p1 = (jnp.zeros((3, HP), jnp.float32)
          .at[0, :HIDDEN].set(w_rel1[0])
          .at[1, :HIDDEN].set(w_root1[0])
          .at[2, :HIDDEN].set(b1))

    # Layers 2..4: merged [W_rel; W_root] (2*HP, HP) blocks, zero-padded on
    # both K and output dims, shipped in bf16.
    def pack_layer_w(w_rel, w_root):
        w = jnp.zeros((2 * HP, HP), jnp.float32)
        w = w.at[:HIDDEN, :HIDDEN].set(w_rel)          # applied to agg
        w = w.at[HP:HP + HIDDEN, :HIDDEN].set(w_root)  # applied to h
        return w

    w_stack = jnp.stack([pack_layer_w(raw_params[i][0], raw_params[i][1])
                         for i in (1, 2, 3)]).astype(jnp.bfloat16)
    b_stack = jnp.zeros((3, HP), jnp.float32)
    for j, i in enumerate((1, 2, 3)):
        b_stack = b_stack.at[j, :HIDDEN].set(raw_params[i][2])

    out = gcn_forward(adj_bf16, x, p1, w_stack, b_stack)
    out = jax.block_until_ready(out)
    assert out.shape == (B, N, HP)

    # --- Reference (pure JAX) matching the kernel's mixed precision -------
    # bf16 operands at every matmul, f32 accumulation / bias / residual.
    bf = lambda a: a.astype(jnp.bfloat16).astype(jnp.float32)

    def ref_forward(adj_g, x_g):
        a = bf(adj_g)
        wr1, wo1, bb1 = raw_params[0]
        h = jnp.maximum((a @ bf(x_g)) * wr1[0] + x_g * wo1[0] + bb1, 0.0)
        for idx, relu in ((1, True), (2, False), (3, False)):
            w_rel, w_root, bb = raw_params[idx]
            aggr = a @ bf(h)
            o = bf(aggr) @ bf(w_rel) + bf(h) @ bf(w_root) + bb
            if relu:
                o = jnp.maximum(o, 0.0)
            h = o + h
        return h

    for b in range(B):
        ref = ref_forward(adj[b], x[b])
        assert jnp.allclose(out[b, :, :HIDDEN], ref, atol=1e-2, rtol=1e-2), \
            "mismatch vs reference"
    # Padded lanes must be exactly zero so the 128-wide layout is canonical.
    assert jnp.all(out[:, :, HIDDEN:] == 0.0)

    print("KERNEL_OK")
</pallas_src>

<mosaic_0001>
module attributes {stable_mosaic.version = 11 : i64} {
  func.func @fused_gcn_kernel(%arg0: i32, %arg1: memref<1x64x64xbf16, #tpu.memory_space<vmem>>, %arg2: memref<1x64x1xf32, #tpu.memory_space<vmem>>, %arg3: memref<3x128xf32, #tpu.memory_space<vmem>>, %arg4: memref<3x256x128xbf16, #tpu.memory_space<vmem>>, %arg5: memref<3x128xf32, #tpu.memory_space<vmem>>, %arg6: memref<1x64x128xf32, #tpu.memory_space<vmem>>) attributes {dimension_semantics = [#tpu.dimension_semantics<parallel>], iteration_bounds = array<i64: 2>, scalar_prefetch = 0 : i64, scratch_operands = 0 : i64, tpu.core_type = #tpu.core_type<tc>, window_params = [{transform_indices = @transform_0, window_bounds = array<i64: 1, 64, 64>}, {transform_indices = @transform_1, window_bounds = array<i64: 1, 64, 1>}, {pipeline_mode = #tpu.pipeline_mode<synchronous>, transform_indices = @transform_2, window_bounds = array<i64: 3, 128>}, {pipeline_mode = #tpu.pipeline_mode<synchronous>, transform_indices = @transform_3, window_bounds = array<i64: 3, 256, 128>}, {pipeline_mode = #tpu.pipeline_mode<synchronous>, transform_indices = @transform_4, window_bounds = array<i64: 3, 128>}, {transform_indices = @transform_5, window_bounds = array<i64: 1, 64, 128>}]} {
    %c0 = arith.constant 0 : index
    %c0_0 = arith.constant 0 : index
    %c0_1 = arith.constant 0 : index
    %0 = vector.load %arg1[%c0, %c0_0, %c0_1] : memref<1x64x64xbf16, #tpu.memory_space<vmem>>, vector<1x64x64xbf16>
    %1 = vector.shape_cast %0 : vector<1x64x64xbf16> to vector<64x64xbf16>
    %c0_2 = arith.constant 0 : index
    %c0_3 = arith.constant 0 : index
    %c0_4 = arith.constant 0 : index
    %2 = vector.load %arg2[%c0_2, %c0_3, %c0_4] : memref<1x64x1xf32, #tpu.memory_space<vmem>>, vector<1x64x1xf32>
    %3 = vector.shape_cast %2 : vector<1x64x1xf32> to vector<64x1xf32>
    %4 = arith.truncf %3 : vector<64x1xf32> to vector<64x1xbf16>
    %cst = arith.constant dense<0.000000e+00> : vector<64x1xf32>
    %5 = tpu.matmul %1, %4, %cst {dimension_numbers = #tpu.dot_dimension_numbers<[1], [0], [0], [1], [0, 0, 1, 1], [], []>} : vector<64x64xbf16>, vector<64x1xbf16>, vector<64x1xf32> -> vector<64x1xf32>
    %c0_5 = arith.constant 0 : index
    %c0_6 = arith.constant 0 : index
    %6 = vector.load %arg3[%c0_5, %c0_6] : memref<3x128xf32, #tpu.memory_space<vmem>>, vector<1x128xf32>
    %7 = vector.broadcast %5 : vector<64x1xf32> to vector<64x128xf32>
    %8 = vector.broadcast %6 : vector<1x128xf32> to vector<64x128xf32>
    %9 = arith.mulf %7, %8 : vector<64x128xf32>
    %c1 = arith.constant 1 : index
    %c0_7 = arith.constant 0 : index
    %10 = vector.load %arg3[%c1, %c0_7] : memref<3x128xf32, #tpu.memory_space<vmem>>, vector<1x128xf32>
    %11 = vector.broadcast %3 : vector<64x1xf32> to vector<64x128xf32>
    %12 = vector.broadcast %10 : vector<1x128xf32> to vector<64x128xf32>
    %13 = arith.mulf %11, %12 : vector<64x128xf32>
    %14 = arith.addf %9, %13 : vector<64x128xf32>
    %c2 = arith.constant 2 : index
    %c0_8 = arith.constant 0 : index
    %15 = vector.load %arg3[%c2, %c0_8] : memref<3x128xf32, #tpu.memory_space<vmem>>, vector<1x128xf32>
    %16 = vector.broadcast %15 : vector<1x128xf32> to vector<64x128xf32>
    %17 = arith.addf %14, %16 : vector<64x128xf32>
    %cst_9 = arith.constant 0.000000e+00 : f32
    %18 = vector.broadcast %cst_9 : f32 to vector<64x128xf32>
    %19 = arith.maximumf %17, %18 : vector<64x128xf32>
    %20 = arith.truncf %19 : vector<64x128xf32> to vector<64x128xbf16>
    %cst_10 = arith.constant dense<0.000000e+00> : vector<64x128xf32>
    %21 = tpu.matmul %1, %20, %cst_10 {dimension_numbers = #tpu.dot_dimension_numbers<[1], [0], [0], [1], [0, 0, 1, 1], [], []>} : vector<64x64xbf16>, vector<64x128xbf16>, vector<64x128xf32> -> vector<64x128xf32>
    %22 = arith.truncf %21 : vector<64x128xf32> to vector<64x128xbf16>
    %23 = tpu.concatenate %22, %20 in 1 : vector<64x128xbf16>, vector<64x128xbf16> -> vector<64x256xbf16>
    %c0_11 = arith.constant 0 : index
    %c0_12 = arith.constant 0 : index
    %c0_13 = arith.constant 0 : index
    %24 = vector.load %arg4[%c0_11, %c0_12, %c0_13] : memref<3x256x128xbf16, #tpu.memory_space<vmem>>, vector<1x256x128xbf16>
    %25 = vector.shape_cast %24 : vector<1x256x128xbf16> to vector<256x128xbf16>
    %cst_14 = arith.constant dense<0.000000e+00> : vector<64x128xf32>
    %26 = tpu.matmul %23, %25, %cst_14 {dimension_numbers = #tpu.dot_dimension_numbers<[1], [0], [0], [1], [0, 0, 1, 1], [], []>} : vector<64x256xbf16>, vector<256x128xbf16>, vector<64x128xf32> -> vector<64x128xf32>
    %c0_15 = arith.constant 0 : index
    %c0_16 = arith.constant 0 : index
    %27 = vector.load %arg5[%c0_15, %c0_16] : memref<3x128xf32, #tpu.memory_space<vmem>>, vector<1x128xf32>
    %28 = vector.broadcast %27 : vector<1x128xf32> to vector<64x128xf32>
    %29 = arith.addf %26, %28 : vector<64x128xf32>
    %cst_17 = arith.constant 0.000000e+00 : f32
    %30 = vector.broadcast %cst_17 : f32 to vector<64x128xf32>
    %31 = arith.maximumf %29, %30 : vector<64x128xf32>
    %32 = arith.addf %31, %19 : vector<64x128xf32>
    %33 = arith.truncf %32 : vector<64x128xf32> to vector<64x128xbf16>
    %cst_18 = arith.constant dense<0.000000e+00> : vector<64x128xf32>
    %34 = tpu.matmul %1, %33, %cst_18 {dimension_numbers = #tpu.dot_dimension_numbers<[1], [0], [0], [1], [0, 0, 1, 1], [], []>} : vector<64x64xbf16>, vector<64x128xbf16>, vector<64x128xf32> -> vector<64x128xf32>
    %35 = arith.truncf %34 : vector<64x128xf32> to vector<64x128xbf16>
    %36 = tpu.concatenate %35, %33 in 1 : vector<64x128xbf16>, vector<64x128xbf16> -> vector<64x256xbf16>
    %c1_19 = arith.constant 1 : index
    %c0_20 = arith.constant 0 : index
    %c0_21 = arith.constant 0 : index
    %37 = vector.load %arg4[%c1_19, %c0_20, %c0_21] : memref<3x256x128xbf16, #tpu.memory_space<vmem>>, vector<1x256x128xbf16>
    %38 = vector.shape_cast %37 : vector<1x256x128xbf16> to vector<256x128xbf16>
    %cst_22 = arith.constant dense<0.000000e+00> : vector<64x128xf32>
    %39 = tpu.matmul %36, %38, %cst_22 {dimension_numbers = #tpu.dot_dimension_numbers<[1], [0], [0], [1], [0, 0, 1, 1], [], []>} : vector<64x256xbf16>, vector<256x128xbf16>, vector<64x128xf32> -> vector<64x128xf32>
    %c1_23 = arith.constant 1 : index
    %c0_24 = arith.constant 0 : index
    %40 = vector.load %arg5[%c1_23, %c0_24] : memref<3x128xf32, #tpu.memory_space<vmem>>, vector<1x128xf32>
    %41 = vector.broadcast %40 : vector<1x128xf32> to vector<64x128xf32>
    %42 = arith.addf %39, %41 : vector<64x128xf32>
    %43 = arith.addf %42, %32 : vector<64x128xf32>
    %44 = arith.truncf %43 : vector<64x128xf32> to vector<64x128xbf16>
    %cst_25 = arith.constant dense<0.000000e+00> : vector<64x128xf32>
    %45 = tpu.matmul %1, %44, %cst_25 {dimension_numbers = #tpu.dot_dimension_numbers<[1], [0], [0], [1], [0, 0, 1, 1], [], []>} : vector<64x64xbf16>, vector<64x128xbf16>, vector<64x128xf32> -> vector<64x128xf32>
    %46 = arith.truncf %45 : vector<64x128xf32> to vector<64x128xbf16>
    %47 = tpu.concatenate %46, %44 in 1 : vector<64x128xbf16>, vector<64x128xbf16> -> vector<64x256xbf16>
    %c2_26 = arith.constant 2 : index
    %c0_27 = arith.constant 0 : index
    %c0_28 = arith.constant 0 : index
    %48 = vector.load %arg4[%c2_26, %c0_27, %c0_28] : memref<3x256x128xbf16, #tpu.memory_space<vmem>>, vector<1x256x128xbf16>
    %49 = vector.shape_cast %48 : vector<1x256x128xbf16> to vector<256x128xbf16>
    %cst_29 = arith.constant dense<0.000000e+00> : vector<64x128xf32>
    %50 = tpu.matmul %47, %49, %cst_29 {dimension_numbers = #tpu.dot_dimension_numbers<[1], [0], [0], [1], [0, 0, 1, 1], [], []>} : vector<64x256xbf16>, vector<256x128xbf16>, vector<64x128xf32> -> vector<64x128xf32>
    %c2_30 = arith.constant 2 : index
    %c0_31 = arith.constant 0 : index
    %51 = vector.load %arg5[%c2_30, %c0_31] : memref<3x128xf32, #tpu.memory_space<vmem>>, vector<1x128xf32>
    %52 = vector.broadcast %51 : vector<1x128xf32> to vector<64x128xf32>
    %53 = arith.addf %50, %52 : vector<64x128xf32>
    %54 = arith.addf %53, %43 : vector<64x128xf32>
    %c0_32 = arith.constant 0 : index
    %c0_33 = arith.constant 0 : index
    %c0_34 = arith.constant 0 : index
    %55 = vector.load %arg6[%c0_32, %c0_33, %c0_34] : memref<1x64x128xf32, #tpu.memory_space<vmem>>, vector<1x64x128xf32>
    %56 = vector.shape_cast %55 : vector<1x64x128xf32> to vector<64x128xf32>
    %57 = vector.shape_cast %54 : vector<64x128xf32> to vector<1x64x128xf32>
    tpu.vector_store %arg6[%c0_32, %c0_33, %c0_34], %57 {strides = array<i32>} : memref<1x64x128xf32, #tpu.memory_space<vmem>>, vector<1x64x128xf32>,
    return
  }
  func.func @transform_0(%arg0: i32) -> (i32, i32, i32) {
    %c0_i32 = arith.constant 0 : i32
    %c0_i32_0 = arith.constant 0 : i32
    %c0_i32_1 = arith.constant 0 : i32
    return %arg0, %c0_i32, %c0_i32_0 : i32, i32, i32
  }
  func.func @transform_1(%arg0: i32) -> (i32, i32, i32) {
    %c0_i32 = arith.constant 0 : i32
    %c0_i32_0 = arith.constant 0 : i32
    %c0_i32_1 = arith.constant 0 : i32
    return %arg0, %c0_i32, %c0_i32_0 : i32, i32, i32
  }
  func.func @transform_2(%arg0: i32) -> (i32, i32) {
    %c0_i32 = arith.constant 0 : i32
    %c0_i32_0 = arith.constant 0 : i32
    %c0_i32_1 = arith.constant 0 : i32
    return %c0_i32, %c0_i32_0 : i32, i32
  }
  func.func @transform_3(%arg0: i32) -> (i32, i32, i32) {
    %c0_i32 = arith.constant 0 : i32
    %c0_i32_0 = arith.constant 0 : i32
    %c0_i32_1 = arith.constant 0 : i32
    %c0_i32_2 = arith.constant 0 : i32
    return %c0_i32, %c0_i32_0, %c0_i32_1 : i32, i32, i32
  }
  func.func @transform_4(%arg0: i32) -> (i32, i32) {
    %c0_i32 = arith.constant 0 : i32
    %c0_i32_0 = arith.constant 0 : i32
    %c0_i32_1 = arith.constant 0 : i32
    return %c0_i32, %c0_i32_0 : i32, i32
  }
  func.func @transform_5(%arg0: i32) -> (i32, i32, i32) {
    %c0_i32 = arith.constant 0 : i32
    %c0_i32_0 = arith.constant 0 : i32
    %c0_i32_1 = arith.constant 0 : i32
    return %arg0, %c0_i32, %c0_i32_0 : i32, i32, i32
  }
}

</mosaic_0001>

<llo_original>
// kernel: tpu_custom_call.1
$region0: #{tpu_custom_call.1}
  #allocation0 [shape = 'u32[]', space=smem, size = 0x4, offset = 0x4, fixed_abs, tag = 'smem constant byte address 0x4 - core index']
  #allocation1 [shape = 'u32[144,128]{1,0:T(1,128)}', space=vmem, size = 0x12000, scoped, tag = 'internal scratch']
  %s0 = inlined_call_operand.vmem [shape: bf16[2,64,64], index: 0, kind: input, shape index: {}]
  %s1 = inlined_call_operand.vmem [shape: f32[2,64,1], index: 1, kind: input, shape index: {}]
  %s2 = inlined_call_operand.vmem [shape: f32[3,128], index: 2, kind: input, shape index: {}]
  %s3 = inlined_call_operand.hbm [shape: bf16[3,256,128], index: 3, kind: input, shape index: {}]
  %s4 = inlined_call_operand.vmem [shape: f32[3,128], index: 4, kind: input, shape index: {}]
  %s5 = inlined_call_operand.hbm [shape: f32[2,64,128], index: 5, kind: output, shape index: {}]
  %s6 = sld [smem:[#allocation0]]
  $region57: #{tpu_custom_call.1} parent=0
    _
  %s8 = ssub.s32 1, %s6
  %s9 = scalar_select 0, %s8, %s6
  $region1: #{tpu_custom_call.1} parent=0
    #allocation2 [shape = 'u8[196608]{0}', space=vmem, size = 0x30000, scoped, tag = 'input window, operand 3, single buffered']
    #allocation3 [shape = 's32[2]{0}', space=sflag, size = 0x8, scoped, tag = 'scoped memory for tpu_custom_call.1']
    #allocation4 [shape = 's32[2]{0}', space=sflag, size = 0x8, scoped, tag = 'scoped memory for tpu_custom_call.1']
    #allocation5 [shape = 'u8[65536]{0}', space=vmem, size = 0x10000, scoped, tag = 'output window, operand 0']
    %10 = vsyncpa [#allocation3], 0
    %11 = vsyncpa [#allocation4], 0
    %s12 = scalar_lea.sflag [#allocation4], 1
    %13 = vsyncpa %s12, 0
    loop: start=0, step=1, limit=4
    $region2: #{tpu_custom_call.1} parent=1 // loop_pre_header
      _
    $region3: #{tpu_custom_call.1} parent=1 // loop_header
      %s15 = sphi 0, %s19
      %p16 = scmp.ge.s32.totalorder %s15, 4
      %s25 = sphi 0, %s27
      %s28 = sphi 0, %s25
      %s29 = sphi 0, %s28
      %s45 = sphi 0, %s29
      %s51 = sphi 0, %s53
      %s54 = sphi 0, %s51
      %s55 = sphi 0, %s54
      %s71 = sphi 0, %s55
      %s75 = sphi 0, %s75
      %s77 = sphi 0, %s75
      %s78 = sphi 0, %s77
      %s92 = sphi 0, %s78
      %s96 = sphi 0, %s96
      %s98 = sphi 0, %s96
      %s99 = sphi 0, %s98
      %s113 = sphi 0, %s99
      %s117 = sphi 0, %s117
      %s119 = sphi 0, %s117
      %s120 = sphi 0, %s119
      %s134 = sphi 0, %s120
      %s140 = sphi 0, %s142
      %s143 = sphi 0, %s140
      %s144 = sphi 0, %s143
      %s160 = sphi 0, %s144
    $region4: #{tpu_custom_call.1} parent=1 // loop_header_branch
      %18 = sbr.rel (%p16) target = $region8
    $region5: #{tpu_custom_call.1} parent=1 // loop_body
      %s20 = ssub.s32 %s15, 1
      %s21 = ssub.s32 %s15, 2
      %s22 = sadd.s32 %s15, 1
      %s23 = ssub.s32 %s15, %s22
      %p24 = scmp.eq.s32.totalorder %s23, 0
      %s26 = sadd.s32 %s25, 1
      %s27 = scalar_select %p24, %s25, %s26
      %p30 = pneg %p24
      %p31 = scmp.eq.s32.totalorder %s15, 1
      %p32 = por %p30, %p31
      %p33 = scmp.ne.s32.totalorder %s25, %s28
      %p34 = scmp.eq.s32.totalorder %s15, 0
      %p35 = por %p33, %p34
      %p36 = scmp.ne.s32.totalorder %s25, %s28
      %p37 = scmp.eq.s32.totalorder %s20, 1
      %p38 = por %p36, %p37
      %p39 = scmp.ne.s32.totalorder %s28, %s29
      %p40 = scmp.eq.s32.totalorder %s20, 0
      %p41 = por %p39, %p40
      %p42 = scmp.ne.s32.totalorder %s28, %s29
      %p43 = scmp.eq.s32.totalorder %s21, 1
      %p44 = por %p42, %p43
      %p46 = scmp.ne.s32.totalorder %s29, %s45
      %p47 = scmp.eq.s32.totalorder %s21, 0
      %p48 = por %p46, %p47
      %s49 = ssub.s32 %s15, %s22
      %p50 = scmp.eq.s32.totalorder %s49, 0
      %s52 = sadd.s32 %s51, 1
      %s53 = scalar_select %p50, %s51, %s52
      %p56 = pneg %p50
      %p57 = scmp.eq.s32.totalorder %s15, 1
      %p58 = por %p56, %p57
      %p59 = scmp.ne.s32.totalorder %s51, %s54
      %p60 = scmp.eq.s32.totalorder %s15, 0
      %p61 = por %p59, %p60
      %p62 = scmp.ne.s32.totalorder %s51, %s54
      %p63 = scmp.eq.s32.totalorder %s20, 1
      %p64 = por %p62, %p63
      %p65 = scmp.ne.s32.totalorder %s54, %s55
      %p66 = scmp.eq.s32.totalorder %s20, 0
      %p67 = por %p65, %p66
      %p68 = scmp.ne.s32.totalorder %s54, %s55
      %p69 = scmp.eq.s32.totalorder %s21, 1
      %p70 = por %p68, %p69
      %p72 = scmp.ne.s32.totalorder %s55, %s71
      %p73 = scmp.eq.s32.totalorder %s21, 0
      %p74 = por %p72, %p73
      %s76 = sadd.s32 %s75, 1
      %p79 = scmp.eq.s32.totalorder %s15, 1
      %p80 = scmp.ne.s32.totalorder %s75, %s77
      %p81 = scmp.eq.s32.totalorder %s15, 0
      %p82 = por %p80, %p81
      %p83 = scmp.ne.s32.totalorder %s75, %s77
      %p84 = scmp.eq.s32.totalorder %s20, 1
      %p85 = por %p83, %p84
      %p86 = scmp.ne.s32.totalorder %s77, %s78
      %p87 = scmp.eq.s32.totalorder %s20, 0
      %p88 = por %p86, %p87
      %p89 = scmp.ne.s32.totalorder %s77, %s78
      %p90 = scmp.eq.s32.totalorder %s21, 1
      %p91 = por %p89, %p90
      %p93 = scmp.ne.s32.totalorder %s78, %s92
      %p94 = scmp.eq.s32.totalorder %s21, 0
      %p95 = por %p93, %p94
      %s97 = sadd.s32 %s96, 1
      %p100 = scmp.eq.s32.totalorder %s15, 1
      %p101 = scmp.ne.s32.totalorder %s96, %s98
      %p102 = scmp.eq.s32.totalorder %s15, 0
      %p103 = por %p101, %p102
      %p104 = scmp.ne.s32.totalorder %s96, %s98
      %p105 = scmp.eq.s32.totalorder %s20, 1
      %p106 = por %p104, %p105
      %p107 = scmp.ne.s32.totalorder %s98, %s99
      %p108 = scmp.eq.s32.totalorder %s20, 0
      %p109 = por %p107, %p108
      %p110 = scmp.ne.s32.totalorder %s98, %s99
      %p111 = scmp.eq.s32.totalorder %s21, 1
      %p112 = por %p110, %p111
      %p114 = scmp.ne.s32.totalorder %s99, %s113
      %p115 = scmp.eq.s32.totalorder %s21, 0
      %p116 = por %p114, %p115
      %s118 = sadd.s32 %s117, 1
      %p121 = scmp.eq.s32.totalorder %s15, 1
      %p122 = scmp.ne.s32.totalorder %s117, %s119
      %p123 = scmp.eq.s32.totalorder %s15, 0
      %p124 = por %p122, %p123
      %p125 = scmp.ne.s32.totalorder %s117, %s119
      %p126 = scmp.eq.s32.totalorder %s20, 1
      %p127 = por %p125, %p126
      %p128 = scmp.ne.s32.totalorder %s119, %s120
      %p129 = scmp.eq.s32.totalorder %s20, 0
      %p130 = por %p128, %p129
      %p131 = scmp.ne.s32.totalorder %s119, %s120
      %p132 = scmp.eq.s32.totalorder %s21, 1
      %p133 = por %p131, %p132
      %p135 = scmp.ne.s32.totalorder %s120, %s134
      %p136 = scmp.eq.s32.totalorder %s21, 0
      %p137 = por %p135, %p136
      %s138 = ssub.s32 %s15, %s22
      %p139 = scmp.eq.s32.totalorder %s138, 0
      %s141 = sadd.s32 %s140, 1
      %s142 = scalar_select %p139, %s140, %s141
      %p145 = pneg %p139
      %p146 = scmp.eq.s32.totalorder %s15, 1
      %p147 = por %p145, %p146
      %p148 = scmp.ne.s32.totalorder %s140, %s143
      %p149 = scmp.eq.s32.totalorder %s15, 0
      %p150 = por %p148, %p149
      %p151 = scmp.ne.s32.totalorder %s140, %s143
      %p152 = scmp.eq.s32.totalorder %s20, 1
      %p153 = por %p151, %p152
      %p154 = scmp.ne.s32.totalorder %s143, %s144
      %p155 = scmp.eq.s32.totalorder %s20, 0
      %p156 = por %p154, %p155
      %p157 = scmp.ne.s32.totalorder %s143, %s144
      %p158 = scmp.eq.s32.totalorder %s21, 1
      %p159 = por %p157, %p158
      %p161 = scmp.ne.s32.totalorder %s144, %s160
      %p162 = scmp.eq.s32.totalorder %s21, 0
      %p163 = por %p161, %p162
      %p164 = scmp.le.s32.totalorder 1, %s15
      %p165 = scmp.lt.s32.totalorder %s15, 3
      %p166 = pnand %p164, %p165
      %p167 = pneg %p166
      // Predicated region
      $region9: #{tpu_custom_call.1} parent=5 // pred_check
        _
      $region10: #{tpu_custom_call.1} parent=5 // pred_check_branch
        %169 = sbr.rel (%p166) target = $region12
      $region11: #{tpu_custom_call.1} parent=5 // pred_region
        %s170 = ssub.s32 %s15, 1
        // Predicated region
        $region13: #{tpu_custom_call.1} parent=11 // pred_check
          %p171 = pneg %p88
        $region14: #{tpu_custom_call.1} parent=11 // pred_check_branch
          %173 = sbr.rel (%p171) target = $region16
        $region15: #{tpu_custom_call.1} parent=11 // pred_region
          _
        $region16: #{tpu_custom_call.1} parent=11 // pred_fallthru
          _
        // Predicated region
        $region17: #{tpu_custom_call.1} parent=11 // pred_check
          %p174 = pneg %p109
        $region18: #{tpu_custom_call.1} parent=11 // pred_check_branch
          %176 = sbr.rel (%p174) target = $region20
        $region19: #{tpu_custom_call.1} parent=11 // pred_region
          %s178 = ssub.s32 6144, 6144
          %179 = vsyncadd [#allocation3], %s178
          %s180 = sshll.u32 [#allocation2], 4
          %s181 = int_to_ptr.vmem [resolvable:$true] %s180
          %186 = dma.hbm_to_vmem [thread:$0]  %s3, 6144, %s181, [#allocation3], 64, 64, 4
        $region20: #{tpu_custom_call.1} parent=11 // pred_fallthru
          _
        // Predicated region
        $region21: #{tpu_custom_call.1} parent=11 // pred_check
          %p187 = pneg %p130
        $region22: #{tpu_custom_call.1} parent=11 // pred_check_branch
          %189 = sbr.rel (%p187) target = $region24
        $region23: #{tpu_custom_call.1} parent=11 // pred_region
          _
        $region24: #{tpu_custom_call.1} parent=11 // pred_fallthru
          _
      $region12: #{tpu_custom_call.1} parent=5 // pred_fallthru
        _
      %p190 = scmp.lt.s32.totalorder %s15, 2
      // Predicated region
      $region25: #{tpu_custom_call.1} parent=5 // pred_check
        %p191 = pneg %p190
      $region26: #{tpu_custom_call.1} parent=5 // pred_check_branch
        %193 = sbr.rel (%p191) target = $region28
      $region27: #{tpu_custom_call.1} parent=5 // pred_region
        // Predicated region
        $region29: #{tpu_custom_call.1} parent=27 // pred_check
          %p194 = pneg %p35
        $region30: #{tpu_custom_call.1} parent=27 // pred_check_branch
          %196 = sbr.rel (%p194) target = $region32
        $region31: #{tpu_custom_call.1} parent=27 // pred_region
          %p197 = scmp.lt.s32.totalorder %s15, 1
          %s198 = scalar_select %p197, %s15, 1
          %s199 = smul.addr %s198, 8
          %s200 = smul.addr %s199, 4
          %s201 = scalar_lea.vmem %s0, %s200
        $region32: #{tpu_custom_call.1} parent=27 // pred_fallthru
          _
        // Predicated region
        $region33: #{tpu_custom_call.1} parent=27 // pred_check
          %p202 = pneg %p61
        $region34: #{tpu_custom_call.1} parent=27 // pred_check_branch
          %204 = sbr.rel (%p202) target = $region36
        $region35: #{tpu_custom_call.1} parent=27 // pred_region
          %p205 = scmp.lt.s32.totalorder %s15, 1
          %s206 = scalar_select %p205, %s15, 1
          %s207 = smul.addr %s206, 8
          %s208 = smul.addr %s207, 8
          %s209 = scalar_lea.vmem %s1, %s208
        $region36: #{tpu_custom_call.1} parent=27 // pred_fallthru
          _
      $region28: #{tpu_custom_call.1} parent=5 // pred_fallthru
        _
      %p210 = scmp.le.s32.totalorder 1, %s15
      %p211 = scmp.lt.s32.totalorder %s15, 3
      %p212 = pnand %p210, %p211
      %p213 = pneg %p212
      // Predicated region
      $region37: #{tpu_custom_call.1} parent=5 // pred_check
        _
      $region38: #{tpu_custom_call.1} parent=5 // pred_check_branch
        %215 = sbr.rel (%p212) target = $region40
      $region39: #{tpu_custom_call.1} parent=5 // pred_region
        %s216 = ssub.s32 %s15, 1
        // Predicated region
        $region41: #{tpu_custom_call.1} parent=39 // pred_check
          %p217 = pneg %p109
        $region42: #{tpu_custom_call.1} parent=39 // pred_check_branch
          %219 = sbr.rel (%p217) target = $region44
        $region43: #{tpu_custom_call.1} parent=39 // pred_region
          %220 = dma.done [#allocation3], 6144
        $region44: #{tpu_custom_call.1} parent=39 // pred_fallthru
          _
        %p221 = scmp.lt.s32.totalorder %s20, 1
        %s222 = scalar_select %p221, %s20, 1
        %s223 = smul.addr %s222, 8
        %s224 = smul.addr %s223, 4
        %s225 = scalar_lea.vmem %s0, %s224
        %p226 = pneg %p41
        %p227 = pneg %p38
        %p228 = scmp.lt.s32.totalorder %s20, 1
        %s229 = scalar_select %p228, %s20, 1
        %s230 = smul.addr %s229, 8
        %s231 = smul.addr %s230, 8
        %s232 = scalar_lea.vmem %s1, %s231
        %p233 = pneg %p67
        %p234 = pneg %p64
        %p235 = pneg %p88
        %p236 = pneg %p85
        %p237 = pneg %p109
        %p238 = pneg %p106
        %p239 = pneg %p130
        %p240 = pneg %p127
        %p241 = pneg %p156
        %p242 = pneg %p153
        %s243 = sand.u32 %s143, 1
        %s244 = scalar_lea.sflag [#allocation4], %s243
        %s245 = sand.u32 %s143, 1
        %s246 = smul.addr %s245, 64
        %s247 = scalar_lea.vmem [#allocation5], %s246
        %p248 = scmp.lt.s32.totalorder %s20, 1
        %s249 = scalar_select %p248, %s20, 1
        %s250 = smul.addr %s249, 8
        %s251 = smul.addr %s250, 4
        %s252 = scalar_lea.vmem %s0, %s251
        %p253 = scmp.lt.s32.totalorder %s20, 1
        %s254 = scalar_select %p253, %s20, 1
        %s255 = smul.addr %s254, 8
        %s256 = smul.addr %s255, 8
        %s257 = scalar_lea.vmem %s1, %s256
        %v259 = vld [vmem:[%s252] sm:$0xf]
        %v260 = vld [vmem:[%s252 + $0x4] sm:$0xf]
        %v261 = vld [vmem:[%s252 + $0x8] sm:$0xf]
        %v262 = vld [vmem:[%s252 + $0xc] sm:$0xf]
        %v263 = vld [vmem:[%s252 + $0x10] sm:$0xf]
        %v264 = vld [vmem:[%s252 + $0x14] sm:$0xf]
        %v265 = vld [vmem:[%s252 + $0x18] sm:$0xf]
        %v266 = vld [vmem:[%s252 + $0x1c] sm:$0xf]
        %v267 = vld [vmem:[%s257] sm:$0xff]
        %v268 = vld [vmem:[%s257 + $0x8] sm:$0xff]
        %v269 = vld [vmem:[%s257 + $0x10] sm:$0xff]
        %v270 = vld [vmem:[%s257 + $0x18] sm:$0xff]
        %v271 = vld [vmem:[%s257 + $0x20] sm:$0xff]
        %v272 = vld [vmem:[%s257 + $0x28] sm:$0xff]
        %v273 = vld [vmem:[%s257 + $0x30] sm:$0xff]
        %v274 = vld [vmem:[%s257 + $0x38] sm:$0xff]
        %v275 = vpack.c.bf16 %v268, %v267
        %v276 = vpack.c.bf16 %v270, %v269
        %v277 = vpack.c.bf16 %v272, %v271
        %v278 = vpack.c.bf16 %v274, %v273
        %v287 = vunpack.c.l.b16 %v259
        %v288 = vunpack.c.l.b16 %v260
        %v289 = vunpack.c.l.b16 %v261
        %v290 = vunpack.c.l.b16 %v262
        %v291 = vunpack.c.l.b16 %v263
        %v292 = vunpack.c.l.b16 %v264
        %v293 = vunpack.c.l.b16 %v265
        %v294 = vunpack.c.l.b16 %v266
        %v295 = vpack.c.b16 %v288, %v287
        %v296 = vpack.c.b16 %v290, %v289
        %v297 = vpack.c.b16 %v292, %v291
        %v298 = vpack.c.b16 %v294, %v293
        %vm299 = vcmask 523264
        %v301 = vsel %vm299, %v295, 0
        %v304 = vsel %vm299, %v296, 0
        %v307 = vsel %vm299, %v297, 0
        %v310 = vsel %vm299, %v298, 0
        %312 = vmatprep.subr.bf16.mxu0 0
        %313 = vmatpush1.bf16.msra.mxu0 %v275
        %314 = vmatprep.subr.bf16.mxu0 0
        %315 = vmatpush1.bf16.msra.mxu0 %v276
        %316 = vmatprep.subr.bf16.mxu0 0
        %317 = vmatpush1.bf16.msra.mxu0 %v277
        %318 = vmatprep.subr.bf16.mxu0 0
        %319 = vmatpush1.bf16.msra.mxu0 %v278
        %320 = vmatprep.subr.bf16.mxu0 0
        %321 = vmatpush1.bf16.msra.mxu0 0
        %322 = vmatprep.subr.bf16.mxu0 0
        %323 = vmatpush1.bf16.msra.mxu0 0
        %324 = vmatprep.subr.bf16.mxu0 0
        %325 = vmatpush1.bf16.msra.mxu0 0
        %326 = vmatprep.subr.bf16.mxu0 0
        %327 = vmatpush1.bf16.msra.mxu0 0
        %328 = vmatprep.subr.bf16.mxu0 0
        %329 = vmatpush1.bf16.msra.mxu0 0
        %330 = vmatprep.subr.bf16.mxu0 0
        %331 = vmatpush1.bf16.msra.mxu0 0
        %332 = vmatprep.subr.bf16.mxu0 0
        %333 = vmatpush1.bf16.msra.mxu0 0
        %334 = vmatprep.subr.bf16.mxu0 0
        %335 = vmatpush1.bf16.msra.mxu0 0
        %336 = vmatprep.subr.bf16.mxu0 0
        %337 = vmatpush1.bf16.msra.mxu0 0
        %338 = vmatprep.subr.bf16.mxu0 0
        %339 = vmatpush1.bf16.msra.mxu0 0
        %340 = vmatprep.subr.bf16.mxu0 0
        %341 = vmatpush1.bf16.msra.mxu0 0
        %342 = vmatprep.subr.bf16.mxu0 0
        %343 = vmatpush1.bf16.msra.mxu0 0
        %344 = vmatprep.mubr.bf16.mxu0 0
        %345 = vmatmul.mubr.bf16.gmra.mrb[0].mxu0 %v301
        %v346 = vpop.f32.mrb[0].mxu0
        %v347 = vadd.f32 0.0, %v346
        %v348 = vpop.f32.mrb[0].mxu0
        %v349 = vpop.f32.mrb[0].mxu0
        %v350 = vadd.f32 0.0, %v349
        %v351 = vpop.f32.mrb[0].mxu0
        %352 = vmatprep.mubr.bf16.mxu0 0
        %353 = vmatmul.mubr.bf16.gmra.mrb[0].mxu0 %v304
        %v354 = vpop.f32.mrb[0].mxu0
        %v355 = vadd.f32 0.0, %v354
        %v356 = vpop.f32.mrb[0].mxu0
        %v357 = vpop.f32.mrb[0].mxu0
        %v358 = vadd.f32 0.0, %v357
        %v359 = vpop.f32.mrb[0].mxu0
        %360 = vmatprep.mubr.bf16.mxu0 0
        %361 = vmatmul.mubr.bf16.gmra.mrb[0].mxu0 %v307
        %v362 = vpop.f32.mrb[0].mxu0
        %v363 = vadd.f32 0.0, %v362
        %v364 = vpop.f32.mrb[0].mxu0
        %v365 = vpop.f32.mrb[0].mxu0
        %v366 = vadd.f32 0.0, %v365
        %v367 = vpop.f32.mrb[0].mxu0
        %368 = vmatprep.mubr.bf16.mxu0 0
        %369 = vmatmul.mubr.bf16.gmra.mrb[0].mxu0 %v310
        %v370 = vpop.f32.mrb[0].mxu0
        %v371 = vadd.f32 0.0, %v370
        %v372 = vpop.f32.mrb[0].mxu0
        %v373 = vpop.f32.mrb[0].mxu0
        %v374 = vadd.f32 0.0, %v373
        %v375 = vpop.f32.mrb[0].mxu0
        %376 = vdwg.mxu0
        %v377 = vld [vmem:[%s2] sm:$0x1]
        %379 = vset.pattern.permute.xlu0 0
        %380 = vperm.xlu0 %379, %v347
        %v381 = vpop.permute.xlu0 %380
        %384 = vset.pattern.permute.xlu0 0
        %385 = vperm.xlu0 %384, %v350
        %v386 = vpop.permute.xlu0 %385
        %389 = vset.pattern.permute.xlu0 0
        %390 = vperm.xlu0 %389, %v355
        %v391 = vpop.permute.xlu0 %390
        %394 = vset.pattern.permute.xlu0 0
        %395 = vperm.xlu0 %394, %v358
        %v396 = vpop.permute.xlu0 %395
        %399 = vset.pattern.permute.xlu0 0
        %400 = vperm.xlu0 %399, %v363
        %v401 = vpop.permute.xlu0 %400
        %404 = vset.pattern.permute.xlu0 0
        %405 = vperm.xlu0 %404, %v366
        %v406 = vpop.permute.xlu0 %405
        %409 = vset.pattern.permute.xlu0 0
        %410 = vperm.xlu0 %409, %v371
        %v411 = vpop.permute.xlu0 %410
        %414 = vset.pattern.permute.xlu0 0
        %415 = vperm.xlu0 %414, %v374
        %v416 = vpop.permute.xlu0 %415
        %v418 = vlaneseq
        %v419 = vshrl.u32 %v418, 7
        %v420 = vsub.s32 0, %v419
        %v421 = vrot.slane %v377, %v420
        %v422 = vmul.f32 %v381, %v421
        %v423 = vmul.f32 %v386, %v421
        %v424 = vmul.f32 %v391, %v421
        %v425 = vmul.f32 %v396, %v421
        %v426 = vmul.f32 %v401, %v421
        %v427 = vmul.f32 %v406, %v421
        %v428 = vmul.f32 %v411, %v421
        %v429 = vmul.f32 %v416, %v421
        %v430 = vld [vmem:[%s2 + $0x1] sm:$0x1]
        %432 = vset.pattern.permute.xlu0 0
        %433 = vperm.xlu0 %432, %v267
        %v434 = vpop.permute.xlu0 %433
        %437 = vset.pattern.permute.xlu0 0
        %438 = vperm.xlu0 %437, %v268
        %v439 = vpop.permute.xlu0 %438
        %442 = vset.pattern.permute.xlu0 0
        %443 = vperm.xlu0 %442, %v269
        %v444 = vpop.permute.xlu0 %443
        %447 = vset.pattern.permute.xlu0 0
        %448 = vperm.xlu0 %447, %v270
        %v449 = vpop.permute.xlu0 %448
        %452 = vset.pattern.permute.xlu0 0
        %453 = vperm.xlu0 %452, %v271
        %v454 = vpop.permute.xlu0 %453
        %457 = vset.pattern.permute.xlu0 0
        %458 = vperm.xlu0 %457, %v272
        %v459 = vpop.permute.xlu0 %458
        %462 = vset.pattern.permute.xlu0 0
        %463 = vperm.xlu0 %462, %v273
        %v464 = vpop.permute.xlu0 %463
        %467 = vset.pattern.permute.xlu0 0
        %468 = vperm.xlu0 %467, %v274
        %v469 = vpop.permute.xlu0 %468
        %v471 = vlaneseq
        %v472 = vshrl.u32 %v471, 7
        %v473 = vsub.s32 0, %v472
        %v474 = vrot.slane %v430, %v473
        %v475 = vmul.f32 %v434, %v474
        %v476 = vmul.f32 %v439, %v474
        %v477 = vmul.f32 %v444, %v474
        %v478 = vmul.f32 %v449, %v474
        %v479 = vmul.f32 %v454, %v474
        %v480 = vmul.f32 %v459, %v474
        %v481 = vmul.f32 %v464, %v474
        %v482 = vmul.f32 %v469, %v474
        %v483 = vadd.f32 %v422, %v475
        %v484 = vadd.f32 %v423, %v476
        %v485 = vadd.f32 %v424, %v477
        %v486 = vadd.f32 %v425, %v478
        %v487 = vadd.f32 %v426, %v479
        %v488 = vadd.f32 %v427, %v480
        %v489 = vadd.f32 %v428, %v481
        %v490 = vadd.f32 %v429, %v482
        %v491 = vld [vmem:[%s2 + $0x2] sm:$0x1]
        %v492 = vlaneseq
        %v493 = vshrl.u32 %v492, 7
        %v494 = vsub.s32 0, %v493
        %v495 = vrot.slane %v491, %v494
        %v496 = vadd.f32 %v483, %v495
        %v497 = vadd.f32 %v484, %v495
        %v498 = vadd.f32 %v485, %v495
        %v499 = vadd.f32 %v486, %v495
        %v500 = vadd.f32 %v487, %v495
        %v501 = vadd.f32 %v488, %v495
        %v502 = vadd.f32 %v489, %v495
        %v503 = vadd.f32 %v490, %v495
        %v504 = vmax.f32 %v496, 0.0
        %v505 = vmax.f32 %v497, 0.0
        %v506 = vmax.f32 %v498, 0.0
        %v507 = vmax.f32 %v499, 0.0
        %v508 = vmax.f32 %v500, 0.0
        %v509 = vmax.f32 %v501, 0.0
        %v510 = vmax.f32 %v502, 0.0
        %v511 = vmax.f32 %v503, 0.0
        %v512 = vpack.c.bf16 %v505, %v504
        %v513 = vpack.c.bf16 %v507, %v506
        %v514 = vpack.c.bf16 %v509, %v508
        %v515 = vpack.c.bf16 %v511, %v510
        %516 = vmatprep.subr.bf16.mxu0 0
        %517 = vmatpush1.bf16.msra.mxu0 %v512
        %518 = vmatprep.subr.bf16.mxu0 0
        %519 = vmatpush1.bf16.msra.mxu0 %v513
        %520 = vmatprep.subr.bf16.mxu0 0
        %521 = vmatpush1.bf16.msra.mxu0 %v514
        %522 = vmatprep.subr.bf16.mxu0 0
        %523 = vmatpush1.bf16.msra.mxu0 %v515
        %524 = vmatprep.subr.bf16.mxu0 0
        %525 = vmatpush1.bf16.msra.mxu0 0
        %526 = vmatprep.subr.bf16.mxu0 0
        %527 = vmatpush1.bf16.msra.mxu0 0
        %528 = vmatprep.subr.bf16.mxu0 0
        %529 = vmatpush1.bf16.msra.mxu0 0
        %530 = vmatprep.subr.bf16.mxu0 0
        %531 = vmatpush1.bf16.msra.mxu0 0
        %532 = vmatprep.subr.bf16.mxu0 0
        %533 = vmatpush1.bf16.msra.mxu0 0
        %534 = vmatprep.subr.bf16.mxu0 0
        %535 = vmatpush1.bf16.msra.mxu0 0
        %536 = vmatprep.subr.bf16.mxu0 0
        %537 = vmatpush1.bf16.msra.mxu0 0
        %538 = vmatprep.subr.bf16.mxu0 0
        %539 = vmatpush1.bf16.msra.mxu0 0
        %540 = vmatprep.subr.bf16.mxu0 0
        %541 = vmatpush1.bf16.msra.mxu0 0
        %542 = vmatprep.subr.bf16.mxu0 0
        %543 = vmatpush1.bf16.msra.mxu0 0
        %544 = vmatprep.subr.bf16.mxu0 0
        %545 = vmatpush1.bf16.msra.mxu0 0
        %546 = vmatprep.subr.bf16.mxu0 0
        %547 = vmatpush1.bf16.msra.mxu0 0
        %548 = vmatprep.mubr.bf16.mxu0 0
        %549 = vmatmul.mubr.bf16.gmra.mrb[0].mxu0 %v301
        %v550 = vpop.f32.mrb[0].mxu0
        %v551 = vadd.f32 0.0, %v550
        %v552 = vpop.f32.mrb[0].mxu0
        %v553 = vpop.f32.mrb[0].mxu0
        %v554 = vadd.f32 0.0, %v553
        %v555 = vpop.f32.mrb[0].mxu0
        %556 = vmatprep.mubr.bf16.mxu0 0
        %557 = vmatmul.mubr.bf16.gmra.mrb[0].mxu0 %v304
        %v558 = vpop.f32.mrb[0].mxu0
        %v559 = vadd.f32 0.0, %v558
        %v560 = vpop.f32.mrb[0].mxu0
        %v561 = vpop.f32.mrb[0].mxu0
        %v562 = vadd.f32 0.0, %v561
        %v563 = vpop.f32.mrb[0].mxu0
        %564 = vmatprep.mubr.bf16.mxu0 0
        %565 = vmatmul.mubr.bf16.gmra.mrb[0].mxu0 %v307
        %v566 = vpop.f32.mrb[0].mxu0
        %v567 = vadd.f32 0.0, %v566
        %v568 = vpop.f32.mrb[0].mxu0
        %v569 = vpop.f32.mrb[0].mxu0
        %v570 = vadd.f32 0.0, %v569
        %v571 = vpop.f32.mrb[0].mxu0
        %572 = vmatprep.mubr.bf16.mxu0 0
        %573 = vmatmul.mubr.bf16.gmra.mrb[0].mxu0 %v310
        %v574 = vpop.f32.mrb[0].mxu0
        %v575 = vadd.f32 0.0, %v574
        %v576 = vpop.f32.mrb[0].mxu0
        %v577 = vpop.f32.mrb[0].mxu0
        %v578 = vadd.f32 0.0, %v577
        %v579 = vpop.f32.mrb[0].mxu0
        %580 = vdwg.mxu0
        %v581 = vpack.c.bf16 %v554, %v551
        %v582 = vpack.c.bf16 %v562, %v559
        %v583 = vpack.c.bf16 %v570, %v567
        %v584 = vpack.c.bf16 %v578, %v575
        %v585 = vld [vmem:[#allocation2] sm:$0xf]
        %v586 = vld [vmem:[#allocation2 + $0x4] sm:$0xf]
        %v587 = vld [vmem:[#allocation2 + $0x8] sm:$0xf]
        %v588 = vld [vmem:[#allocation2 + $0xc] sm:$0xf]
        %v589 = vld [vmem:[#allocation2 + $0x10] sm:$0xf]
        %v590 = vld [vmem:[#allocation2 + $0x14] sm:$0xf]
        %v591 = vld [vmem:[#allocation2 + $0x18] sm:$0xf]
        %v592 = vld [vmem:[#allocation2 + $0x1c] sm:$0xf]
        %v593 = vld [vmem:[#allocation2 + $0x20] sm:$0xf]
        %v594 = vld [vmem:[#allocation2 + $0x24] sm:$0xf]
        %v595 = vld [vmem:[#allocation2 + $0x28] sm:$0xf]
        %v596 = vld [vmem:[#allocation2 + $0x2c] sm:$0xf]
        %v597 = vld [vmem:[#allocation2 + $0x30] sm:$0xf]
        %v598 = vld [vmem:[#allocation2 + $0x34] sm:$0xf]
        %v599 = vld [vmem:[#allocation2 + $0x38] sm:$0xf]
        %v600 = vld [vmem:[#allocation2 + $0x3c] sm:$0xf]
        %v601 = vld [vmem:[#allocation2 + $0x40] sm:$0xf]
        %v602 = vld [vmem:[#allocation2 + $0x44] sm:$0xf]
        %v603 = vld [vmem:[#allocation2 + $0x48] sm:$0xf]
        %v604 = vld [vmem:[#allocation2 + $0x4c] sm:$0xf]
        %v605 = vld [vmem:[#allocation2 + $0x50] sm:$0xf]
        %v606 = vld [vmem:[#allocation2 + $0x54] sm:$0xf]
        %v607 = vld [vmem:[#allocation2 + $0x58] sm:$0xf]
        %v608 = vld [vmem:[#allocation2 + $0x5c] sm:$0xf]
        %v609 = vld [vmem:[#allocation2 + $0x60] sm:$0xf]
        %v610 = vld [vmem:[#allocation2 + $0x64] sm:$0xf]
        %v611 = vld [vmem:[#allocation2 + $0x68] sm:$0xf]
        %v612 = vld [vmem:[#allocation2 + $0x6c] sm:$0xf]
        %v613 = vld [vmem:[#allocation2 + $0x70] sm:$0xf]
        %v614 = vld [vmem:[#allocation2 + $0x74] sm:$0xf]
        %v615 = vld [vmem:[#allocation2 + $0x78] sm:$0xf]
        %v616 = vld [vmem:[#allocation2 + $0x7c] sm:$0xf]
        %v617 = vld [vmem:[%s4] sm:$0x1]
        %v618 = vlaneseq
        %v619 = vshrl.u32 %v618, 7
        %v620 = vsub.s32 0, %v619
        %v621 = vrot.slane %v617, %v620
        %v654 = vunpack.c.l.b16 %v585
        %v655 = vunpack.c.l.b16 %v586
        %v656 = vunpack.c.l.b16 %v587
        %v657 = vunpack.c.l.b16 %v588
        %v658 = vunpack.c.l.b16 %v589
        %v659 = vunpack.c.l.b16 %v590
        %v660 = vunpack.c.l.b16 %v591
        %v661 = vunpack.c.l.b16 %v592
        %v662 = vunpack.c.l.b16 %v593
        %v663 = vunpack.c.l.b16 %v594
        %v664 = vunpack.c.l.b16 %v595
        %v665 = vunpack.c.l.b16 %v596
        %v666 = vunpack.c.l.b16 %v597
        %v667 = vunpack.c.l.b16 %v598
        %v668 = vunpack.c.l.b16 %v599
        %v669 = vunpack.c.l.b16 %v600
        %v670 = vunpack.c.l.b16 %v601
        %v671 = vunpack.c.l.b16 %v602
        %v672 = vunpack.c.l.b16 %v603
        %v673 = vunpack.c.l.b16 %v604
        %v674 = vunpack.c.l.b16 %v605
        %v675 = vunpack.c.l.b16 %v606
        %v676 = vunpack.c.l.b16 %v607
        %v677 = vunpack.c.l.b16 %v608
        %v678 = vunpack.c.l.b16 %v609
        %v679 = vunpack.c.l.b16 %v610
        %v680 = vunpack.c.l.b16 %v611
        %v681 = vunpack.c.l.b16 %v612
        %v682 = vunpack.c.l.b16 %v613
        %v683 = vunpack.c.l.b16 %v614
        %v684 = vunpack.c.l.b16 %v615
        %v685 = vunpack.c.l.b16 %v616
        %v686 = vpack.c.b16 %v655, %v654
        %v687 = vpack.c.b16 %v657, %v656
        %v688 = vpack.c.b16 %v659, %v658
        %v689 = vpack.c.b16 %v661, %v660
        %v690 = vpack.c.b16 %v663, %v662
        %v691 = vpack.c.b16 %v665, %v664
        %v692 = vpack.c.b16 %v667, %v666
        %v693 = vpack.c.b16 %v669, %v668
        %v694 = vpack.c.b16 %v671, %v670
        %v695 = vpack.c.b16 %v673, %v672
        %v696 = vpack.c.b16 %v675, %v674
        %v697 = vpack.c.b16 %v677, %v676
        %v698 = vpack.c.b16 %v679, %v678
        %v699 = vpack.c.b16 %v681, %v680
        %v700 = vpack.c.b16 %v683, %v682
        %v701 = vpack.c.b16 %v685, %v684
        %718 = vmatprep.subr.bf16.mxu0 0
        %719 = vmatpush1.bf16.msra.mxu0 %v686
        %720 = vmatprep.subr.bf16.mxu0 0
        %721 = vmatpush1.bf16.msra.mxu0 %v687
        %722 = vmatprep.subr.bf16.mxu0 0
        %723 = vmatpush1.bf16.msra.mxu0 %v688
        %724 = vmatprep.subr.bf16.mxu0 0
        %725 = vmatpush1.bf16.msra.mxu0 %v689
        %726 = vmatprep.subr.bf16.mxu0 0
        %727 = vmatpush1.bf16.msra.mxu0 %v690
        %728 = vmatprep.subr.bf16.mxu0 0
        %729 = vmatpush1.bf16.msra.mxu0 %v691
        %730 = vmatprep.subr.bf16.mxu0 0
        %731 = vmatpush1.bf16.msra.mxu0 %v692
        %732 = vmatprep.subr.bf16.mxu0 0
        %733 = vmatpush1.bf16.msra.mxu0 %v693
        %734 = vmatprep.subr.bf16.mxu0 0
        %735 = vmatpush1.bf16.msra.mxu0 %v694
        %736 = vmatprep.subr.bf16.mxu0 0
        %737 = vmatpush1.bf16.msra.mxu0 %v695
        %738 = vmatprep.subr.bf16.mxu0 0
        %739 = vmatpush1.bf16.msra.mxu0 %v696
        %740 = vmatprep.subr.bf16.mxu0 0
        %741 = vmatpush1.bf16.msra.mxu0 %v697
        %742 = vmatprep.subr.bf16.mxu0 0
        %743 = vmatpush1.bf16.msra.mxu0 %v698
        %744 = vmatprep.subr.bf16.mxu0 0
        %745 = vmatpush1.bf16.msra.mxu0 %v699
        %746 = vmatprep.subr.bf16.mxu0 0
        %747 = vmatpush1.bf16.msra.mxu0 %v700
        %748 = vmatprep.subr.bf16.mxu0 0
        %749 = vmatpush1.bf16.msra.mxu0 %v701
        %750 = vmatprep.mubr.bf16.mxu0 %v512
        %751 = vmatmul.mubr.bf16.gmra.mrb[0].mxu0 %v581
        %v752 = vpop.f32.mrb[0].mxu0
        %v753 = vadd.f32 %v621, %v752
        %v754 = vpop.f32.mrb[0].mxu0
        %v755 = vpop.f32.mrb[0].mxu0
        %v756 = vadd.f32 %v621, %v755
        %v757 = vpop.f32.mrb[0].mxu0
        %758 = vmatprep.mubr.bf16.mxu0 %v513
        %759 = vmatmul.mubr.bf16.gmra.mrb[0].mxu0 %v582
        %v760 = vpop.f32.mrb[0].mxu0
        %v761 = vadd.f32 %v621, %v760
        %v762 = vpop.f32.mrb[0].mxu0
        %v763 = vpop.f32.mrb[0].mxu0
        %v764 = vadd.f32 %v621, %v763
        %v765 = vpop.f32.mrb[0].mxu0
        %766 = vmatprep.mubr.bf16.mxu0 %v514
        %767 = vmatmul.mubr.bf16.gmra.mrb[0].mxu0 %v583
        %v768 = vpop.f32.mrb[0].mxu0
        %v769 = vadd.f32 %v621, %v768
        %v770 = vpop.f32.mrb[0].mxu0
        %v771 = vpop.f32.mrb[0].mxu0
        %v772 = vadd.f32 %v621, %v771
        %v773 = vpop.f32.mrb[0].mxu0
        %774 = vmatprep.mubr.bf16.mxu0 %v515
        %775 = vmatmul.mubr.bf16.gmra.mrb[0].mxu0 %v584
        %v776 = vpop.f32.mrb[0].mxu0
        %v777 = vadd.f32 %v621, %v776
        %v778 = vpop.f32.mrb[0].mxu0
        %v779 = vpop.f32.mrb[0].mxu0
        %v780 = vadd.f32 %v621, %v779
        %v781 = vpop.f32.mrb[0].mxu0
        %782 = vdwg.mxu0
        %v783 = vmax.f32 %v753, 0.0
        %v784 = vmax.f32 %v756, 0.0
        %v785 = vmax.f32 %v761, 0.0
        %v786 = vmax.f32 %v764, 0.0
        %v787 = vmax.f32 %v769, 0.0
        %v788 = vmax.f32 %v772, 0.0
        %v789 = vmax.f32 %v777, 0.0
        %v790 = vmax.f32 %v780, 0.0
        %v791 = vadd.f32 %v783, %v504
        %v792 = vadd.f32 %v784, %v505
        %v793 = vadd.f32 %v785, %v506
        %v794 = vadd.f32 %v786, %v507
        %v795 = vadd.f32 %v787, %v508
        %v796 = vadd.f32 %v788, %v509
        %v797 = vadd.f32 %v789, %v510
        %v798 = vadd.f32 %v790, %v511
        %v799 = vpack.c.bf16 %v792, %v791
        %v800 = vpack.c.bf16 %v794, %v793
        %v801 = vpack.c.bf16 %v796, %v795
        %v802 = vpack.c.bf16 %v798, %v797
        %803 = vmatprep.subr.bf16.mxu0 0
        %804 = vmatpush1.bf16.msra.mxu0 %v799
        %805 = vmatprep.subr.bf16.mxu0 0
        %806 = vmatpush1.bf16.msra.mxu0 %v800
        %807 = vmatprep.subr.bf16.mxu0 0
        %808 = vmatpush1.bf16.msra.mxu0 %v801
        %809 = vmatprep.subr.bf16.mxu0 0
        %810 = vmatpush1.bf16.msra.mxu0 %v802
        %811 = vmatprep.subr.bf16.mxu0 0
        %812 = vmatpush1.bf16.msra.mxu0 0
        %813 = vmatprep.subr.bf16.mxu0 0
        %814 = vmatpush1.bf16.msra.mxu0 0
        %815 = vmatprep.subr.bf16.mxu0 0
        %816 = vmatpush1.bf16.msra.mxu0 0
        %817 = vmatprep.subr.bf16.mxu0 0
        %818 = vmatpush1.bf16.msra.mxu0 0
        %819 = vmatprep.subr.bf16.mxu0 0
        %820 = vmatpush1.bf16.msra.mxu0 0
        %821 = vmatprep.subr.bf16.mxu0 0
        %822 = vmatpush1.bf16.msra.mxu0 0
        %823 = vmatprep.subr.bf16.mxu0 0
        %824 = vmatpush1.bf16.msra.mxu0 0
        %825 = vmatprep.subr.bf16.mxu0 0
        %826 = vmatpush1.bf16.msra.mxu0 0
        %827 = vmatprep.subr.bf16.mxu0 0
        %828 = vmatpush1.bf16.msra.mxu0 0
        %829 = vmatprep.subr.bf16.mxu0 0
        %830 = vmatpush1.bf16.msra.mxu0 0
        %831 = vmatprep.subr.bf16.mxu0 0
        %832 = vmatpush1.bf16.msra.mxu0 0
        %833 = vmatprep.subr.bf16.mxu0 0
        %834 = vmatpush1.bf16.msra.mxu0 0
        %835 = vmatprep.mubr.bf16.mxu0 0
        %836 = vmatmul.mubr.bf16.gmra.mrb[0].mxu0 %v301
        %v837 = vpop.f32.mrb[0].mxu0
        %v838 = vadd.f32 0.0, %v837
        %v839 = vpop.f32.mrb[0].mxu0
        %v840 = vpop.f32.mrb[0].mxu0
        %v841 = vadd.f32 0.0, %v840
        %v842 = vpop.f32.mrb[0].mxu0
        %843 = vmatprep.mubr.bf16.mxu0 0
        %844 = vmatmul.mubr.bf16.gmra.mrb[0].mxu0 %v304
        %v845 = vpop.f32.mrb[0].mxu0
        %v846 = vadd.f32 0.0, %v845
        %v847 = vpop.f32.mrb[0].mxu0
        %v848 = vpop.f32.mrb[0].mxu0
        %v849 = vadd.f32 0.0, %v848
        %v850 = vpop.f32.mrb[0].mxu0
        %851 = vmatprep.mubr.bf16.mxu0 0
        %852 = vmatmul.mubr.bf16.gmra.mrb[0].mxu0 %v307
        %v853 = vpop.f32.mrb[0].mxu0
        %v854 = vadd.f32 0.0, %v853
        %v855 = vpop.f32.mrb[0].mxu0
        %v856 = vpop.f32.mrb[0].mxu0
        %v857 = vadd.f32 0.0, %v856
        %v858 = vpop.f32.mrb[0].mxu0
        %859 = vmatprep.mubr.bf16.mxu0 0
        %860 = vmatmul.mubr.bf16.gmra.mrb[0].mxu0 %v310
        %v861 = vpop.f32.mrb[0].mxu0
        %v862 = vadd.f32 0.0, %v861
        %v863 = vpop.f32.mrb[0].mxu0
        %v864 = vpop.f32.mrb[0].mxu0
        %v865 = vadd.f32 0.0, %v864
        %v866 = vpop.f32.mrb[0].mxu0
        %867 = vdwg.mxu0
        %v868 = vpack.c.bf16 %v841, %v838
        %v869 = vpack.c.bf16 %v849, %v846
        %v870 = vpack.c.bf16 %v857, %v854
        %v871 = vpack.c.bf16 %v865, %v862
        %s872 = scalar_lea.vmem [#allocation2], 128
        %v873 = vld [vmem:[%s872] sm:$0xf]
        %v874 = vld [vmem:[%s872 + $0x4] sm:$0xf]
        %v875 = vld [vmem:[%s872 + $0x8] sm:$0xf]
        %v876 = vld [vmem:[%s872 + $0xc] sm:$0xf]
        %v877 = vld [vmem:[%s872 + $0x10] sm:$0xf]
        %v878 = vld [vmem:[%s872 + $0x14] sm:$0xf]
        %v879 = vld [vmem:[%s872 + $0x18] sm:$0xf]
        %v880 = vld [vmem:[%s872 + $0x1c] sm:$0xf]
        %v881 = vld [vmem:[%s872 + $0x20] sm:$0xf]
        %v882 = vld [vmem:[%s872 + $0x24] sm:$0xf]
        %v883 = vld [vmem:[%s872 + $0x28] sm:$0xf]
        %v884 = vld [vmem:[%s872 + $0x2c] sm:$0xf]
        %v885 = vld [vmem:[%s872 + $0x30] sm:$0xf]
        %v886 = vld [vmem:[%s872 + $0x34] sm:$0xf]
        %v887 = vld [vmem:[%s872 + $0x38] sm:$0xf]
        %v888 = vld [vmem:[%s872 + $0x3c] sm:$0xf]
        %v889 = vld [vmem:[%s872 + $0x40] sm:$0xf]
        %v890 = vld [vmem:[%s872 + $0x44] sm:$0xf]
        %v891 = vld [vmem:[%s872 + $0x48] sm:$0xf]
        %v892 = vld [vmem:[%s872 + $0x4c] sm:$0xf]
        %v893 = vld [vmem:[%s872 + $0x50] sm:$0xf]
        %v894 = vld [vmem:[%s872 + $0x54] sm:$0xf]
        %v895 = vld [vmem:[%s872 + $0x58] sm:$0xf]
        %v896 = vld [vmem:[%s872 + $0x5c] sm:$0xf]
        %v897 = vld [vmem:[%s872 + $0x60] sm:$0xf]
        %v898 = vld [vmem:[%s872 + $0x64] sm:$0xf]
        %v899 = vld [vmem:[%s872 + $0x68] sm:$0xf]
        %v900 = vld [vmem:[%s872 + $0x6c] sm:$0xf]
        %v901 = vld [vmem:[%s872 + $0x70] sm:$0xf]
        %v902 = vld [vmem:[%s872 + $0x74] sm:$0xf]
        %v903 = vld [vmem:[%s872 + $0x78] sm:$0xf]
        %v904 = vld [vmem:[%s872 + $0x7c] sm:$0xf]
        %v905 = vld [vmem:[%s4 + $0x1] sm:$0x1]
        %v906 = vlaneseq
        %v907 = vshrl.u32 %v906, 7
        %v908 = vsub.s32 0, %v907
        %v909 = vrot.slane %v905, %v908
        %v942 = vunpack.c.l.b16 %v873
        %v943 = vunpack.c.l.b16 %v874
        %v944 = vunpack.c.l.b16 %v875
        %v945 = vunpack.c.l.b16 %v876
        %v946 = vunpack.c.l.b16 %v877
        %v947 = vunpack.c.l.b16 %v878
        %v948 = vunpack.c.l.b16 %v879
        %v949 = vunpack.c.l.b16 %v880
        %v950 = vunpack.c.l.b16 %v881
        %v951 = vunpack.c.l.b16 %v882
        %v952 = vunpack.c.l.b16 %v883
        %v953 = vunpack.c.l.b16 %v884
        %v954 = vunpack.c.l.b16 %v885
        %v955 = vunpack.c.l.b16 %v886
        %v956 = vunpack.c.l.b16 %v887
        %v957 = vunpack.c.l.b16 %v888
        %v958 = vunpack.c.l.b16 %v889
        %v959 = vunpack.c.l.b16 %v890
        %v960 = vunpack.c.l.b16 %v891
        %v961 = vunpack.c.l.b16 %v892
        %v962 = vunpack.c.l.b16 %v893
        %v963 = vunpack.c.l.b16 %v894
        %v964 = vunpack.c.l.b16 %v895
        %v965 = vunpack.c.l.b16 %v896
        %v966 = vunpack.c.l.b16 %v897
        %v967 = vunpack.c.l.b16 %v898
        %v968 = vunpack.c.l.b16 %v899
        %v969 = vunpack.c.l.b16 %v900
        %v970 = vunpack.c.l.b16 %v901
        %v971 = vunpack.c.l.b16 %v902
        %v972 = vunpack.c.l.b16 %v903
        %v973 = vunpack.c.l.b16 %v904
        %v974 = vpack.c.b16 %v943, %v942
        %v975 = vpack.c.b16 %v945, %v944
        %v976 = vpack.c.b16 %v947, %v946
        %v977 = vpack.c.b16 %v949, %v948
        %v978 = vpack.c.b16 %v951, %v950
        %v979 = vpack.c.b16 %v953, %v952
        %v980 = vpack.c.b16 %v955, %v954
        %v981 = vpack.c.b16 %v957, %v956
        %v982 = vpack.c.b16 %v959, %v958
        %v983 = vpack.c.b16 %v961, %v960
        %v984 = vpack.c.b16 %v963, %v962
        %v985 = vpack.c.b16 %v965, %v964
        %v986 = vpack.c.b16 %v967, %v966
        %v987 = vpack.c.b16 %v969, %v968
        %v988 = vpack.c.b16 %v971, %v970
        %v989 = vpack.c.b16 %v973, %v972
        %1006 = vmatprep.subr.bf16.mxu0 0
        %1007 = vmatpush1.bf16.msra.mxu0 %v974
        %1008 = vmatprep.subr.bf16.mxu0 0
        %1009 = vmatpush1.bf16.msra.mxu0 %v975
        %1010 = vmatprep.subr.bf16.mxu0 0
        %1011 = vmatpush1.bf16.msra.mxu0 %v976
        %1012 = vmatprep.subr.bf16.mxu0 0
        %1013 = vmatpush1.bf16.msra.mxu0 %v977
        %1014 = vmatprep.subr.bf16.mxu0 0
        %1015 = vmatpush1.bf16.msra.mxu0 %v978
        %1016 = vmatprep.subr.bf16.mxu0 0
        %1017 = vmatpush1.bf16.msra.mxu0 %v979
        %1018 = vmatprep.subr.bf16.mxu0 0
        %1019 = vmatpush1.bf16.msra.mxu0 %v980
        %1020 = vmatprep.subr.bf16.mxu0 0
        %1021 = vmatpush1.bf16.msra.mxu0 %v981
        %1022 = vmatprep.subr.bf16.mxu0 0
        %1023 = vmatpush1.bf16.msra.mxu0 %v982
        %1024 = vmatprep.subr.bf16.mxu0 0
        %1025 = vmatpush1.bf16.msra.mxu0 %v983
        %1026 = vmatprep.subr.bf16.mxu0 0
        %1027 = vmatpush1.bf16.msra.mxu0 %v984
        %1028 = vmatprep.subr.bf16.mxu0 0
        %1029 = vmatpush1.bf16.msra.mxu0 %v985
        %1030 = vmatprep.subr.bf16.mxu0 0
        %1031 = vmatpush1.bf16.msra.mxu0 %v986
        %1032 = vmatprep.subr.bf16.mxu0 0
        %1033 = vmatpush1.bf16.msra.mxu0 %v987
        %1034 = vmatprep.subr.bf16.mxu0 0
        %1035 = vmatpush1.bf16.msra.mxu0 %v988
        %1036 = vmatprep.subr.bf16.mxu0 0
        %1037 = vmatpush1.bf16.msra.mxu0 %v989
        %1038 = vmatprep.mubr.bf16.mxu0 %v799
        %1039 = vmatmul.mubr.bf16.gmra.mrb[0].mxu0 %v868
        %v1040 = vpop.f32.mrb[0].mxu0
        %v1041 = vadd.f32 %v909, %v1040
        %v1042 = vpop.f32.mrb[0].mxu0
        %v1043 = vpop.f32.mrb[0].mxu0
        %v1044 = vadd.f32 %v909, %v1043
        %v1045 = vpop.f32.mrb[0].mxu0
        %1046 = vmatprep.mubr.bf16.mxu0 %v800
        %1047 = vmatmul.mubr.bf16.gmra.mrb[0].mxu0 %v869
        %v1048 = vpop.f32.mrb[0].mxu0
        %v1049 = vadd.f32 %v909, %v1048
        %v1050 = vpop.f32.mrb[0].mxu0
        %v1051 = vpop.f32.mrb[0].mxu0
        %v1052 = vadd.f32 %v909, %v1051
        %v1053 = vpop.f32.mrb[0].mxu0
        %1054 = vmatprep.mubr.bf16.mxu0 %v801
        %1055 = vmatmul.mubr.bf16.gmra.mrb[0].mxu0 %v870
        %v1056 = vpop.f32.mrb[0].mxu0
        %v1057 = vadd.f32 %v909, %v1056
        %v1058 = vpop.f32.mrb[0].mxu0
        %v1059 = vpop.f32.mrb[0].mxu0
        %v1060 = vadd.f32 %v909, %v1059
        %v1061 = vpop.f32.mrb[0].mxu0
        %1062 = vmatprep.mubr.bf16.mxu0 %v802
        %1063 = vmatmul.mubr.bf16.gmra.mrb[0].mxu0 %v871
        %v1064 = vpop.f32.mrb[0].mxu0
        %v1065 = vadd.f32 %v909, %v1064
        %v1066 = vpop.f32.mrb[0].mxu0
        %v1067 = vpop.f32.mrb[0].mxu0
        %v1068 = vadd.f32 %v909, %v1067
        %v1069 = vpop.f32.mrb[0].mxu0
        %1070 = vdwg.mxu0
        %v1071 = vadd.f32 %v1041, %v791
        %v1072 = vadd.f32 %v1044, %v792
        %v1073 = vadd.f32 %v1049, %v793
        %v1074 = vadd.f32 %v1052, %v794
        %v1075 = vadd.f32 %v1057, %v795
        %v1076 = vadd.f32 %v1060, %v796
        %v1077 = vadd.f32 %v1065, %v797
        %v1078 = vadd.f32 %v1068, %v798
        %v1079 = vpack.c.bf16 %v1072, %v1071
        %v1080 = vpack.c.bf16 %v1074, %v1073
        %v1081 = vpack.c.bf16 %v1076, %v1075
        %v1082 = vpack.c.bf16 %v1078, %v1077
        %1083 = vmatprep.subr.bf16.mxu0 0
        %1084 = vmatpush1.bf16.msra.mxu0 %v1079
        %1085 = vmatprep.subr.bf16.mxu0 0
        %1086 = vmatpush1.bf16.msra.mxu0 %v1080
        %1087 = vmatprep.subr.bf16.mxu0 0
        %1088 = vmatpush1.bf16.msra.mxu0 %v1081
        %1089 = vmatprep.subr.bf16.mxu0 0
        %1090 = vmatpush1.bf16.msra.mxu0 %v1082
        %1091 = vmatprep.subr.bf16.mxu0 0
        %1092 = vmatpush1.bf16.msra.mxu0 0
        %1093 = vmatprep.subr.bf16.mxu0 0
        %1094 = vmatpush1.bf16.msra.mxu0 0
        %1095 = vmatprep.subr.bf16.mxu0 0
        %1096 = vmatpush1.bf16.msra.mxu0 0
        %1097 = vmatprep.subr.bf16.mxu0 0
        %1098 = vmatpush1.bf16.msra.mxu0 0
        %1099 = vmatprep.subr.bf16.mxu0 0
        %1100 = vmatpush1.bf16.msra.mxu0 0
        %1101 = vmatprep.subr.bf16.mxu0 0
        %1102 = vmatpush1.bf16.msra.mxu0 0
        %1103 = vmatprep.subr.bf16.mxu0 0
        %1104 = vmatpush1.bf16.msra.mxu0 0
        %1105 = vmatprep.subr.bf16.mxu0 0
        %1106 = vmatpush1.bf16.msra.mxu0 0
        %1107 = vmatprep.subr.bf16.mxu0 0
        %1108 = vmatpush1.bf16.msra.mxu0 0
        %1109 = vmatprep.subr.bf16.mxu0 0
        %1110 = vmatpush1.bf16.msra.mxu0 0
        %1111 = vmatprep.subr.bf16.mxu0 0
        %1112 = vmatpush1.bf16.msra.mxu0 0
        %1113 = vmatprep.subr.bf16.mxu0 0
        %1114 = vmatpush1.bf16.msra.mxu0 0
        %1115 = vmatprep.mubr.bf16.mxu0 0
        %1116 = vmatmul.mubr.bf16.gmra.mrb[0].mxu0 %v301
        %v1117 = vpop.f32.mrb[0].mxu0
        %v1118 = vadd.f32 0.0, %v1117
        %v1119 = vpop.f32.mrb[0].mxu0
        %v1120 = vpop.f32.mrb[0].mxu0
        %v1121 = vadd.f32 0.0, %v1120
        %v1122 = vpop.f32.mrb[0].mxu0
        %1123 = vmatprep.mubr.bf16.mxu0 0
        %1124 = vmatmul.mubr.bf16.gmra.mrb[0].mxu0 %v304
        %v1125 = vpop.f32.mrb[0].mxu0
        %v1126 = vadd.f32 0.0, %v1125
        %v1127 = vpop.f32.mrb[0].mxu0
        %v1128 = vpop.f32.mrb[0].mxu0
        %v1129 = vadd.f32 0.0, %v1128
        %v1130 = vpop.f32.mrb[0].mxu0
        %1131 = vmatprep.mubr.bf16.mxu0 0
        %1132 = vmatmul.mubr.bf16.gmra.mrb[0].mxu0 %v307
        %v1133 = vpop.f32.mrb[0].mxu0
        %v1134 = vadd.f32 0.0, %v1133
        %v1135 = vpop.f32.mrb[0].mxu0
        %v1136 = vpop.f32.mrb[0].mxu0
        %v1137 = vadd.f32 0.0, %v1136
        %v1138 = vpop.f32.mrb[0].mxu0
        %1139 = vmatprep.mubr.bf16.mxu0 0
        %1140 = vmatmul.mubr.bf16.gmra.mrb[0].mxu0 %v310
        %v1141 = vpop.f32.mrb[0].mxu0
        %v1142 = vadd.f32 0.0, %v1141
        %v1143 = vpop.f32.mrb[0].mxu0
        %v1144 = vpop.f32.mrb[0].mxu0
        %v1145 = vadd.f32 0.0, %v1144
        %v1146 = vpop.f32.mrb[0].mxu0
        %1147 = vdwg.mxu0
        %v1148 = vpack.c.bf16 %v1121, %v1118
        %v1149 = vpack.c.bf16 %v1129, %v1126
        %v1150 = vpack.c.bf16 %v1137, %v1134
        %v1151 = vpack.c.bf16 %v1145, %v1142
        %s1152 = scalar_lea.vmem [#allocation2], 256
        %v1153 = vld [vmem:[%s1152] sm:$0xf]
        %v1154 = vld [vmem:[%s1152 + $0x4] sm:$0xf]
        %v1155 = vld [vmem:[%s1152 + $0x8] sm:$0xf]
        %v1156 = vld [vmem:[%s1152 + $0xc] sm:$0xf]
        %v1157 = vld [vmem:[%s1152 + $0x10] sm:$0xf]
        %v1158 = vld [vmem:[%s1152 + $0x14] sm:$0xf]
        %v1159 = vld [vmem:[%s1152 + $0x18] sm:$0xf]
        %v1160 = vld [vmem:[%s1152 + $0x1c] sm:$0xf]
        %v1161 = vld [vmem:[%s1152 + $0x20] sm:$0xf]
        %v1162 = vld [vmem:[%s1152 + $0x24] sm:$0xf]
        %v1163 = vld [vmem:[%s1152 + $0x28] sm:$0xf]
        %v1164 = vld [vmem:[%s1152 + $0x2c] sm:$0xf]
        %v1165 = vld [vmem:[%s1152 + $0x30] sm:$0xf]
        %v1166 = vld [vmem:[%s1152 + $0x34] sm:$0xf]
        %v1167 = vld [vmem:[%s1152 + $0x38] sm:$0xf]
        %v1168 = vld [vmem:[%s1152 + $0x3c] sm:$0xf]
        %v1169 = vld [vmem:[%s1152 + $0x40] sm:$0xf]
        %v1170 = vld [vmem:[%s1152 + $0x44] sm:$0xf]
        %v1171 = vld [vmem:[%s1152 + $0x48] sm:$0xf]
        %v1172 = vld [vmem:[%s1152 + $0x4c] sm:$0xf]
        %v1173 = vld [vmem:[%s1152 + $0x50] sm:$0xf]
        %v1174 = vld [vmem:[%s1152 + $0x54] sm:$0xf]
        %v1175 = vld [vmem:[%s1152 + $0x58] sm:$0xf]
        %v1176 = vld [vmem:[%s1152 + $0x5c] sm:$0xf]
        %v1177 = vld [vmem:[%s1152 + $0x60] sm:$0xf]
        %v1178 = vld [vmem:[%s1152 + $0x64] sm:$0xf]
        %v1179 = vld [vmem:[%s1152 + $0x68] sm:$0xf]
        %v1180 = vld [vmem:[%s1152 + $0x6c] sm:$0xf]
        %v1181 = vld [vmem:[%s1152 + $0x70] sm:$0xf]
        %v1182 = vld [vmem:[%s1152 + $0x74] sm:$0xf]
        %v1183 = vld [vmem:[%s1152 + $0x78] sm:$0xf]
        %v1184 = vld [vmem:[%s1152 + $0x7c] sm:$0xf]
        %v1185 = vld [vmem:[%s4 + $0x2] sm:$0x1]
        %v1186 = vlaneseq
        %v1187 = vshrl.u32 %v1186, 7
        %v1188 = vsub.s32 0, %v1187
        %v1189 = vrot.slane %v1185, %v1188
        %v1222 = vunpack.c.l.b16 %v1153
        %v1223 = vunpack.c.l.b16 %v1154
        %v1224 = vunpack.c.l.b16 %v1155
        %v1225 = vunpack.c.l.b16 %v1156
        %v1226 = vunpack.c.l.b16 %v1157
        %v1227 = vunpack.c.l.b16 %v1158
        %v1228 = vunpack.c.l.b16 %v1159
        %v1229 = vunpack.c.l.b16 %v1160
        %v1230 = vunpack.c.l.b16 %v1161
        %v1231 = vunpack.c.l.b16 %v1162
        %v1232 = vunpack.c.l.b16 %v1163
        %v1233 = vunpack.c.l.b16 %v1164
        %v1234 = vunpack.c.l.b16 %v1165
        %v1235 = vunpack.c.l.b16 %v1166
        %v1236 = vunpack.c.l.b16 %v1167
        %v1237 = vunpack.c.l.b16 %v1168
        %v1238 = vunpack.c.l.b16 %v1169
        %v1239 = vunpack.c.l.b16 %v1170
        %v1240 = vunpack.c.l.b16 %v1171
        %v1241 = vunpack.c.l.b16 %v1172
        %v1242 = vunpack.c.l.b16 %v1173
        %v1243 = vunpack.c.l.b16 %v1174
        %v1244 = vunpack.c.l.b16 %v1175
        %v1245 = vunpack.c.l.b16 %v1176
        %v1246 = vunpack.c.l.b16 %v1177
        %v1247 = vunpack.c.l.b16 %v1178
        %v1248 = vunpack.c.l.b16 %v1179
        %v1249 = vunpack.c.l.b16 %v1180
        %v1250 = vunpack.c.l.b16 %v1181
        %v1251 = vunpack.c.l.b16 %v1182
        %v1252 = vunpack.c.l.b16 %v1183
        %v1253 = vunpack.c.l.b16 %v1184
        %v1254 = vpack.c.b16 %v1223, %v1222
        %v1255 = vpack.c.b16 %v1225, %v1224
        %v1256 = vpack.c.b16 %v1227, %v1226
        %v1257 = vpack.c.b16 %v1229, %v1228
        %v1258 = vpack.c.b16 %v1231, %v1230
        %v1259 = vpack.c.b16 %v1233, %v1232
        %v1260 = vpack.c.b16 %v1235, %v1234
        %v1261 = vpack.c.b16 %v1237, %v1236
        %v1262 = vpack.c.b16 %v1239, %v1238
        %v1263 = vpack.c.b16 %v1241, %v1240
        %v1264 = vpack.c.b16 %v1243, %v1242
        %v1265 = vpack.c.b16 %v1245, %v1244
        %v1266 = vpack.c.b16 %v1247, %v1246
        %v1267 = vpack.c.b16 %v1249, %v1248
        %v1268 = vpack.c.b16 %v1251, %v1250
        %v1269 = vpack.c.b16 %v1253, %v1252
        %1286 = vmatprep.subr.bf16.mxu0 0
        %1287 = vmatpush1.bf16.msra.mxu0 %v1254
        %1288 = vmatprep.subr.bf16.mxu0 0
        %1289 = vmatpush1.bf16.msra.mxu0 %v1255
        %1290 = vmatprep.subr.bf16.mxu0 0
        %1291 = vmatpush1.bf16.msra.mxu0 %v1256
        %1292 = vmatprep.subr.bf16.mxu0 0
        %1293 = vmatpush1.bf16.msra.mxu0 %v1257
        %1294 = vmatprep.subr.bf16.mxu0 0
        %1295 = vmatpush1.bf16.msra.mxu0 %v1258
        %1296 = vmatprep.subr.bf16.mxu0 0
        %1297 = vmatpush1.bf16.msra.mxu0 %v1259
        %1298 = vmatprep.subr.bf16.mxu0 0
        %1299 = vmatpush1.bf16.msra.mxu0 %v1260
        %1300 = vmatprep.subr.bf16.mxu0 0
        %1301 = vmatpush1.bf16.msra.mxu0 %v1261
        %1302 = vmatprep.subr.bf16.mxu0 0
        %1303 = vmatpush1.bf16.msra.mxu0 %v1262
        %1304 = vmatprep.subr.bf16.mxu0 0
        %1305 = vmatpush1.bf16.msra.mxu0 %v1263
        %1306 = vmatprep.subr.bf16.mxu0 0
        %1307 = vmatpush1.bf16.msra.mxu0 %v1264
        %1308 = vmatprep.subr.bf16.mxu0 0
        %1309 = vmatpush1.bf16.msra.mxu0 %v1265
        %1310 = vmatprep.subr.bf16.mxu0 0
        %1311 = vmatpush1.bf16.msra.mxu0 %v1266
        %1312 = vmatprep.subr.bf16.mxu0 0
        %1313 = vmatpush1.bf16.msra.mxu0 %v1267
        %1314 = vmatprep.subr.bf16.mxu0 0
        %1315 = vmatpush1.bf16.msra.mxu0 %v1268
        %1316 = vmatprep.subr.bf16.mxu0 0
        %1317 = vmatpush1.bf16.msra.mxu0 %v1269
        %1318 = vmatprep.mubr.bf16.mxu0 %v1079
        %1319 = vmatmul.mubr.bf16.gmra.mrb[0].mxu0 %v1148
        %v1320 = vpop.f32.mrb[0].mxu0
        %v1321 = vadd.f32 %v1189, %v1320
        %v1322 = vpop.f32.mrb[0].mxu0
        %v1323 = vpop.f32.mrb[0].mxu0
        %v1324 = vadd.f32 %v1189, %v1323
        %v1325 = vpop.f32.mrb[0].mxu0
        %1326 = vmatprep.mubr.bf16.mxu0 %v1080
        %1327 = vmatmul.mubr.bf16.gmra.mrb[0].mxu0 %v1149
        %v1328 = vpop.f32.mrb[0].mxu0
        %v1329 = vadd.f32 %v1189, %v1328
        %v1330 = vpop.f32.mrb[0].mxu0
        %v1331 = vpop.f32.mrb[0].mxu0
        %v1332 = vadd.f32 %v1189, %v1331
        %v1333 = vpop.f32.mrb[0].mxu0
        %1334 = vmatprep.mubr.bf16.mxu0 %v1081
        %1335 = vmatmul.mubr.bf16.gmra.mrb[0].mxu0 %v1150
        %v1336 = vpop.f32.mrb[0].mxu0
        %v1337 = vadd.f32 %v1189, %v1336
        %v1338 = vpop.f32.mrb[0].mxu0
        %v1339 = vpop.f32.mrb[0].mxu0
        %v1340 = vadd.f32 %v1189, %v1339
        %v1341 = vpop.f32.mrb[0].mxu0
        %1342 = vmatprep.mubr.bf16.mxu0 %v1082
        %1343 = vmatmul.mubr.bf16.gmra.mrb[0].mxu0 %v1151
        %v1344 = vpop.f32.mrb[0].mxu0
        %v1345 = vadd.f32 %v1189, %v1344
        %v1346 = vpop.f32.mrb[0].mxu0
        %v1347 = vpop.f32.mrb[0].mxu0
        %v1348 = vadd.f32 %v1189, %v1347
        %v1349 = vpop.f32.mrb[0].mxu0
        %1350 = vdwg.mxu0
        %v1351 = vadd.f32 %v1321, %v1071
        %v1352 = vadd.f32 %v1324, %v1072
        %v1353 = vadd.f32 %v1329, %v1073
        %v1354 = vadd.f32 %v1332, %v1074
        %v1355 = vadd.f32 %v1337, %v1075
        %v1356 = vadd.f32 %v1340, %v1076
        %v1357 = vadd.f32 %v1345, %v1077
        %v1358 = vadd.f32 %v1348, %v1078
        %1359 = vst [vmem:[%s247] sm:$0xff] %v1351
        %1360 = vst [vmem:[%s247 + $0x8] sm:$0xff] %v1352
        %1361 = vst [vmem:[%s247 + $0x10] sm:$0xff] %v1353
        %1362 = vst [vmem:[%s247 + $0x18] sm:$0xff] %v1354
        %1363 = vst [vmem:[%s247 + $0x20] sm:$0xff] %v1355
        %1364 = vst [vmem:[%s247 + $0x28] sm:$0xff] %v1356
        %1365 = vst [vmem:[%s247 + $0x30] sm:$0xff] %v1357
        %1366 = vst [vmem:[%s247 + $0x38] sm:$0xff] %v1358
        %s1367 = sand.u32 %s143, 1
        %s1368 = scalar_lea.sflag [#allocation4], %s1367
        %s1369 = sand.u32 %s143, 1
        %s1370 = smul.addr %s1369, 64
        %s1371 = scalar_lea.vmem [#allocation5], %s1370
        // Predicated region
        $region45: #{tpu_custom_call.1} parent=39 // pred_check
          %p1372 = pneg %p153
        $region46: #{tpu_custom_call.1} parent=39 // pred_check_branch
          %1374 = sbr.rel (%p1372) target = $region48
        $region47: #{tpu_custom_call.1} parent=39 // pred_region
          %s1376 = ssub.s32 1024, 1024
          %1377 = vsyncadd %s1368, %s1376
          %s1378 = smul.addr %s20, 8
          %s1379 = smul.addr %s1378, 128
          %s1380 = scalar_lea.hbm %s5, %s1379
          %s1381 = sshll.u32 %s1371, 4
          %s1382 = int_to_ptr.vmem [resolvable:$true] %s1381
          %1387 = dma.vmem_to_hbm [thread:$0]  %s1382, 1024, %s1380, %s1368, 128, 128, 8
        $region48: #{tpu_custom_call.1} parent=39 // pred_fallthru
          _
      $region40: #{tpu_custom_call.1} parent=5 // pred_fallthru
        _
      %p1388 = scmp.le.s32.totalorder 2, %s15
      // Predicated region
      $region49: #{tpu_custom_call.1} parent=5 // pred_check
        %p1389 = pneg %p1388
      $region50: #{tpu_custom_call.1} parent=5 // pred_check_branch
        %1391 = sbr.rel (%p1389) target = $region52
      $region51: #{tpu_custom_call.1} parent=5 // pred_region
        %s1392 = ssub.s32 %s15, 2
        // Predicated region
        $region53: #{tpu_custom_call.1} parent=51 // pred_check
          %p1393 = pneg %p159
        $region54: #{tpu_custom_call.1} parent=51 // pred_check_branch
          %1395 = sbr.rel (%p1393) target = $region56
        $region55: #{tpu_custom_call.1} parent=51 // pred_region
          %s1396 = sand.u32 %s144, 1
          %s1397 = scalar_lea.sflag [#allocation4], %s1396
          %s1398 = sand.u32 %s144, 1
          %s1399 = smul.addr %s1398, 64
          %s1400 = scalar_lea.vmem [#allocation5], %s1399
          %1401 = dma.done %s1397, 1024
        $region56: #{tpu_custom_call.1} parent=51 // pred_fallthru
          _
      $region52: #{tpu_custom_call.1} parent=5 // pred_fallthru
        _
    $region6: #{tpu_custom_call.1} parent=1 // loop_footer
      %s19 = sadd.s32 1, %s15
    $region7: #{tpu_custom_call.1} parent=1 // loop_footer_branch
      %14 = sbr.rel target = $region3
    $region8: #{tpu_custom_call.1} parent=1 // loop_exit
      _
    %1402 = vsyncpa [#allocation3], 1
    %s1403 = scalar_lea.sflag [#allocation3], 1
    %1404 = vsyncpa %s1403, 1
    %1405 = vsyncpa [#allocation4], 1
    %s1406 = scalar_lea.sflag [#allocation4], 1
    %1407 = vsyncpa %s1406, 1

</llo_original>
